<compile_context>
chip_gen: v7x
topology: tpu7x:2x2x1
jax: 0.10.0
libtpu: 0.0.40
codegen_flags: <defaults>
</compile_context>

<pallas_src>
import jax
import jax.numpy as jnp
from jax.experimental import pallas as pl
from jax.experimental.pallas import tpu as pltpu

P = 10  # number of "fair prompt" tokens (rows of fair_sent_dist), fixed by the module


# -----------------------------------------------------------------------------
# Kernel 1: running argmax over the vocab axis (softmax deleted -- dead work).
# -----------------------------------------------------------------------------
def _argmax_kernel(logits_ref, noise_ref, ids_ref, m_sc):
    # logits_ref, noise_ref : (P, TV) f32 tiles of fair_sent_dist / gumbel noise
    # ids_ref               : (P, 1) i32 output, resident across the V grid axis
    # m_sc                  : (P, 1) f32 running-max scratch
    t = pl.program_id(0)
    pn, tv = logits_ref.shape

    @pl.when(t == 0)
    def _():
        m_sc[...] = jnp.full_like(m_sc, -jnp.inf)
        ids_ref[...] = jnp.zeros_like(ids_ref)

    # argmax(softmax(y)) == argmax(y): work directly on the perturbed logits.
    y = logits_ref[...] + noise_ref[...]                              # (P, TV)
    tile_max = jnp.max(y, axis=1, keepdims=True)                      # (P, 1)
    col = jax.lax.broadcasted_iota(jnp.int32, (pn, tv), 1) + t * tv   # global vocab idx
    sentinel = jnp.iinfo(jnp.int32).max
    tile_idx = jnp.min(jnp.where(y == tile_max, col, sentinel),
                       axis=1, keepdims=True)                         # first max in tile

    # Strict '>' keeps the earlier index on exact cross-tile ties (first occurrence).
    better = tile_max > m_sc[...]
    ids_ref[...] = jnp.where(better, tile_idx, ids_ref[...])
    m_sc[...] = jnp.where(better, tile_max, m_sc[...])


# -----------------------------------------------------------------------------
# Kernel 2: DMA row-gather of embedding rows, table left in HBM.
# -----------------------------------------------------------------------------
def _gather_kernel(ids_ref, w_hbm, out_ref, copy_sems):
    # ids_ref   : (B*(P+L),) i32 in SMEM (scalar prefetch) -- row ids in final layout
    # w_hbm     : (V, D) embedding table, left in HBM (memory_space=pl.ANY)
    # out_ref   : (1, P+L, D) VMEM output block for the current batch element
    # copy_sems : (P+L,) DMA semaphores
    b = pl.program_id(0)
    rows = out_ref.shape[1]
    base = b * rows

    copies = []
    for j in range(rows):                       # static unroll; rows = P+L is small
        row = ids_ref[base + j]
        cp = pltpu.make_async_copy(
            w_hbm.at[pl.ds(row, 1), :],         # (1, D) table row in HBM
            out_ref.at[0, pl.ds(j, 1), :],      # (1, D) destination row in VMEM
            copy_sems.at[j])
        cp.start()
        copies.append(cp)
    for cp in copies:                           # all row DMAs overlap
        cp.wait()


# -----------------------------------------------------------------------------
# Wrapper
# -----------------------------------------------------------------------------
def categorical_emb_forward(input_ids, attn_mask, fair_sent_dist, emb_weight, noise_key):
    """Forward pass of CategoricalEmb. Returns (embeddings, attention_mask)."""
    B, L = input_ids.shape
    V, D = emb_weight.shape
    Pn = fair_sent_dist.shape[0]

    # Gumbel noise for F.gumbel_softmax (deterministic via a JAX PRNG key).
    noise = jax.random.gumbel(noise_key, (Pn, V), dtype=fair_sent_dist.dtype)

    # Vocab tile for the argmax reduction (keeps VMEM small, enables pipelining).
    if V % 512 == 0:
        tv = 512
    elif V % 128 == 0:
        tv = 128
    else:
        tv = V

    prompt_ids = pl.pallas_call(
        _argmax_kernel,
        out_shape=jax.ShapeDtypeStruct((Pn, 1), jnp.int32),
        grid=(V // tv,),
        in_specs=[pl.BlockSpec((Pn, tv), lambda t: (0, t)),
                  pl.BlockSpec((Pn, tv), lambda t: (0, t))],
        out_specs=pl.BlockSpec((Pn, 1), lambda t: (0, 0)),
        scratch_shapes=[pltpu.VMEM((Pn, 1), jnp.float32)],
        compiler_params=pltpu.CompilerParams(dimension_semantics=("arbitrary",)),
    )(fair_sent_dist, noise)
    prompt_ids = prompt_ids[:, 0]                                    # (P,) int32
    # NOTE: torch.argmax returns int64; int32 indices are used here.

    # Row ids laid out exactly like the final output: [prompt_ids ; input_ids[b]] per batch.
    ids_full = jnp.concatenate(
        [jnp.broadcast_to(prompt_ids[None, :], (B, Pn)),
         input_ids.astype(jnp.int32)], axis=1).reshape(-1)           # (B*(P+L),)

    embeddings = pl.pallas_call(
        _gather_kernel,
        out_shape=jax.ShapeDtypeStruct((B, Pn + L, D), emb_weight.dtype),
        grid_spec=pltpu.PrefetchScalarGridSpec(
            num_scalar_prefetch=1,
            grid=(B,),
            in_specs=[pl.BlockSpec(memory_space=pl.ANY)],            # table stays in HBM
            out_specs=pl.BlockSpec((1, Pn + L, D), lambda b, ids: (b, 0, 0)),
            scratch_shapes=[pltpu.SemaphoreType.DMA((Pn + L,))],
        ),
        compiler_params=pltpu.CompilerParams(dimension_semantics=("parallel",)),
    )(ids_full, emb_weight)

    # Glue: attention mask = [ones(B, P) ; attn_mask]
    attention_mask = jnp.concatenate(
        [jnp.ones((B, Pn), dtype=attn_mask.dtype), attn_mask], axis=1)

    # TODO(synk): the custom straight-through backward of GumbelSoftmax is not
    # implemented (forward pass only).
    return embeddings, attention_mask


if __name__ == "__main__":
    key = jax.random.PRNGKey(0)
    k_dist, k_emb, k_ids, k_noise = jax.random.split(key, 4)

    # Small shapes consistent with the module:
    B, L = 2, 8          # batch, input sequence length
    V, D = 256, 32       # vocab size (emb.weight.shape[0]), embedding dim

    fair_sent_dist = jax.random.normal(k_dist, (P, V), dtype=jnp.float32)
    emb_weight = jax.random.normal(k_emb, (V, D), dtype=jnp.float32)
    input_ids = jax.random.randint(k_ids, (B, L), 0, V, dtype=jnp.int32)
    attn_mask = jnp.ones((B, L), dtype=jnp.int32)

    embeddings, attention_mask = categorical_emb_forward(
        input_ids, attn_mask, fair_sent_dist, emb_weight, k_noise)
    jax.block_until_ready((embeddings, attention_mask))

    assert embeddings.shape == (B, P + L, D)
    assert attention_mask.shape == (B, P + L)

    # Sanity check against a pure-JAX reference (same noise).
    # argmax(softmax(y)) == argmax(y), so compare on the raw perturbed logits.
    g = jax.random.gumbel(k_noise, (P, V), dtype=jnp.float32)
    ref_ids = jnp.argmax(fair_sent_dist + g, axis=1)
    ref_prompt = emb_weight[ref_ids]                                   # (P, D)
    ref_tok = emb_weight[input_ids]                                    # (B, L, D)
    ref_emb = jnp.concatenate(
        [jnp.broadcast_to(ref_prompt[None], (B, P, D)), ref_tok], axis=1)
    assert jnp.allclose(embeddings, ref_emb, atol=1e-6), "mismatch vs reference"
    assert jnp.all(attention_mask[:, :P] == 1)
    assert jnp.all(attention_mask[:, P:] == attn_mask)

    print("KERNEL_OK")
</pallas_src>

<mosaic_0001>
module attributes {stable_mosaic.version = 11 : i64} {
  func.func @_argmax_kernel(%arg0: i32, %arg1: memref<10x128xf32, #tpu.memory_space<vmem>>, %arg2: memref<10x128xf32, #tpu.memory_space<vmem>>, %arg3: memref<10x1xi32, #tpu.memory_space<vmem>>, %arg4: memref<10x1xf32, #tpu.memory_space<vmem>>) attributes {dimension_semantics = [#tpu.dimension_semantics<arbitrary>], iteration_bounds = array<i64: 2>, scalar_prefetch = 0 : i64, scratch_operands = 1 : i64, tpu.core_type = #tpu.core_type<tc>, window_params = [{transform_indices = @transform_0, window_bounds = array<i64: 10, 128>}, {transform_indices = @transform_1, window_bounds = array<i64: 10, 128>}, {pipeline_mode = #tpu.pipeline_mode<synchronous>, transform_indices = @transform_2, window_bounds = array<i64: 10, 1>}]} {
    %c0_i32 = arith.constant 0 : i32
    %0 = arith.cmpi eq, %arg0, %c0_i32 : i32
    %1 = arith.extui %0 : i1 to i32
    %c0_i32_0 = arith.constant 0 : i32
    %2 = arith.cmpi ne, %1, %c0_i32_0 : i32
    scf.if %2 {
      %cst_15 = arith.constant 0xFF800000 : f32
      %26 = vector.broadcast %cst_15 : f32 to vector<10x1xf32>
      %c0_16 = arith.constant 0 : index
      %c0_17 = arith.constant 0 : index
      %27 = vector.load %arg4[%c0_16, %c0_17] : memref<10x1xf32, #tpu.memory_space<vmem>>, vector<10x1xf32>
      tpu.vector_store %arg4[%c0_16, %c0_17], %26 {strides = array<i32>} : memref<10x1xf32, #tpu.memory_space<vmem>>, vector<10x1xf32>,
      %c0_i32_18 = arith.constant 0 : i32
      %28 = vector.broadcast %c0_i32_18 : i32 to vector<10x1xi32>
      %c0_19 = arith.constant 0 : index
      %c0_20 = arith.constant 0 : index
      %29 = vector.load %arg3[%c0_19, %c0_20] : memref<10x1xi32, #tpu.memory_space<vmem>>, vector<10x1xi32>
      tpu.vector_store %arg3[%c0_19, %c0_20], %28 {strides = array<i32>} : memref<10x1xi32, #tpu.memory_space<vmem>>, vector<10x1xi32>,
    } else {
    }
    %c0 = arith.constant 0 : index
    %c0_1 = arith.constant 0 : index
    %3 = vector.load %arg1[%c0, %c0_1] : memref<10x128xf32, #tpu.memory_space<vmem>>, vector<10x128xf32>
    %c0_2 = arith.constant 0 : index
    %c0_3 = arith.constant 0 : index
    %4 = vector.load %arg2[%c0_2, %c0_3] : memref<10x128xf32, #tpu.memory_space<vmem>>, vector<10x128xf32>
    %5 = arith.addf %3, %4 : vector<10x128xf32>
    %cst = arith.constant dense<0xFF800000> : vector<10xf32>
    %6 = vector.multi_reduction <maximumf>, %5, %cst [1] : vector<10x128xf32> to vector<10xf32>
    %7 = vector.shape_cast %6 : vector<10xf32> to vector<10x1xf32>
    %8 = tpu.iota {dimensions = array<i32: 1>} : vector<10x128xi32>
    %c128_i32 = arith.constant 128 : i32
    %9 = arith.muli %arg0, %c128_i32 : i32
    %10 = vector.broadcast %9 : i32 to vector<10x128xi32>
    %11 = arith.addi %8, %10 : vector<10x128xi32>
    %12 = vector.broadcast %7 : vector<10x1xf32> to vector<10x128xf32>
    %13 = arith.cmpf oeq, %5, %12 : vector<10x128xf32>
    %c2147483647_i32 = arith.constant 2147483647 : i32
    %14 = vector.broadcast %c2147483647_i32 : i32 to vector<10x128xi32>
    %15 = arith.select %13, %11, %14 : vector<10x128xi1>, vector<10x128xi32>
    %cst_4 = arith.constant dense<2147483647> : vector<10xi32>
    %16 = vector.multi_reduction <minsi>, %15, %cst_4 [1] : vector<10x128xi32> to vector<10xi32>
    %17 = vector.shape_cast %16 : vector<10xi32> to vector<10x1xi32>
    %c0_5 = arith.constant 0 : index
    %c0_6 = arith.constant 0 : index
    %18 = vector.load %arg4[%c0_5, %c0_6] : memref<10x1xf32, #tpu.memory_space<vmem>>, vector<10x1xf32>
    %19 = arith.cmpf ogt, %7, %18 : vector<10x1xf32>
    %c0_7 = arith.constant 0 : index
    %c0_8 = arith.constant 0 : index
    %20 = vector.load %arg3[%c0_7, %c0_8] : memref<10x1xi32, #tpu.memory_space<vmem>>, vector<10x1xi32>
    %21 = arith.select %19, %17, %20 : vector<10x1xi1>, vector<10x1xi32>
    %c0_9 = arith.constant 0 : index
    %c0_10 = arith.constant 0 : index
    %22 = vector.load %arg3[%c0_9, %c0_10] : memref<10x1xi32, #tpu.memory_space<vmem>>, vector<10x1xi32>
    tpu.vector_store %arg3[%c0_9, %c0_10], %21 {strides = array<i32>} : memref<10x1xi32, #tpu.memory_space<vmem>>, vector<10x1xi32>,
    %c0_11 = arith.constant 0 : index
    %c0_12 = arith.constant 0 : index
    %23 = vector.load %arg4[%c0_11, %c0_12] : memref<10x1xf32, #tpu.memory_space<vmem>>, vector<10x1xf32>
    %24 = arith.select %19, %7, %23 : vector<10x1xi1>, vector<10x1xf32>
    %c0_13 = arith.constant 0 : index
    %c0_14 = arith.constant 0 : index
    %25 = vector.load %arg4[%c0_13, %c0_14] : memref<10x1xf32, #tpu.memory_space<vmem>>, vector<10x1xf32>
    tpu.vector_store %arg4[%c0_13, %c0_14], %24 {strides = array<i32>} : memref<10x1xf32, #tpu.memory_space<vmem>>, vector<10x1xf32>,
    return
  }
  func.func @transform_0(%arg0: i32) -> (i32, i32) {
    %c0_i32 = arith.constant 0 : i32
    %c0_i32_0 = arith.constant 0 : i32
    return %c0_i32, %arg0 : i32, i32
  }
  func.func @transform_1(%arg0: i32) -> (i32, i32) {
    %c0_i32 = arith.constant 0 : i32
    %c0_i32_0 = arith.constant 0 : i32
    return %c0_i32, %arg0 : i32, i32
  }
  func.func @transform_2(%arg0: i32) -> (i32, i32) {
    %c0_i32 = arith.constant 0 : i32
    %c0_i32_0 = arith.constant 0 : i32
    %c0_i32_1 = arith.constant 0 : i32
    return %c0_i32, %c0_i32_0 : i32, i32
  }
}

</mosaic_0001>

<llo_original>
// kernel: tpu_custom_call.1
$region0: #{tpu_custom_call.1}
  #allocation0 [shape = 'u32[]', space=smem, size = 0x4, offset = 0x4, fixed_abs, tag = 'smem constant byte address 0x4 - core index']
  #allocation1 [shape = 'u32[144,128]{1,0:T(1,128)}', space=vmem, size = 0x12000, scoped, tag = 'internal scratch']
  #allocation2 [shape = 'f32[10,1]{1,0:T(8,128)}', space=vmem, size = 0x2000, scoped, tag = 'scratch operand']
  %s0 = inlined_call_operand.hbm [shape: f32[10,256], index: 0, kind: input, shape index: {}]
  %s1 = inlined_call_operand.hbm [shape: f32[10,256], index: 1, kind: input, shape index: {}]
  %s2 = inlined_call_operand.vmem [shape: s32[10,1], index: 2, kind: output, shape index: {}]
  %s3 = sld [smem:[#allocation0]]
  $region53: #{tpu_custom_call.1} parent=0
    _
  %s5 = ssub.s32 1, %s3
  %s6 = scalar_select 0, %s5, %s3
  $region1: #{tpu_custom_call.1} parent=0
    #allocation3 [shape = 'u8[16384]{0}', space=vmem, size = 0x4000, scoped, tag = 'input window, operand 0']
    #allocation4 [shape = 's32[2]{0}', space=sflag, size = 0x8, scoped, tag = 'scoped memory for tpu_custom_call.1']
    #allocation5 [shape = 'u8[16384]{0}', space=vmem, size = 0x4000, scoped, tag = 'input window, operand 1']
    #allocation6 [shape = 's32[2]{0}', space=sflag, size = 0x8, scoped, tag = 'scoped memory for tpu_custom_call.1']
    %7 = vsyncpa [#allocation4], 0
    %s8 = scalar_lea.sflag [#allocation4], 1
    %9 = vsyncpa %s8, 0
    %10 = vsyncpa [#allocation6], 0
    %s11 = scalar_lea.sflag [#allocation6], 1
    %12 = vsyncpa %s11, 0
    loop: start=0, step=1, limit=4
    $region2: #{tpu_custom_call.1} parent=1 // loop_pre_header
      _
    $region3: #{tpu_custom_call.1} parent=1 // loop_header
      %s14 = sphi 0, %s18
      %p15 = scmp.ge.s32.totalorder %s14, 4
      %s24 = sphi 0, %s26
      %s27 = sphi 0, %s24
      %s28 = sphi 0, %s27
      %s44 = sphi 0, %s28
      %s50 = sphi 0, %s52
      %s53 = sphi 0, %s50
      %s54 = sphi 0, %s53
      %s70 = sphi 0, %s54
      %s74 = sphi 0, %s74
      %s76 = sphi 0, %s74
      %s77 = sphi 0, %s76
      %s91 = sphi 0, %s77
    $region4: #{tpu_custom_call.1} parent=1 // loop_header_branch
      %17 = sbr.rel (%p15) target = $region8
    $region5: #{tpu_custom_call.1} parent=1 // loop_body
      %s19 = ssub.s32 %s14, 1
      %s20 = ssub.s32 %s14, 2
      %s21 = sadd.s32 %s14, 1
      %s22 = ssub.s32 %s14, %s21
      %p23 = scmp.eq.s32.totalorder %s22, 0
      %s25 = sadd.s32 %s24, 1
      %s26 = scalar_select %p23, %s24, %s25
      %p29 = pneg %p23
      %p30 = scmp.eq.s32.totalorder %s14, 1
      %p31 = por %p29, %p30
      %p32 = scmp.ne.s32.totalorder %s24, %s27
      %p33 = scmp.eq.s32.totalorder %s14, 0
      %p34 = por %p32, %p33
      %p35 = scmp.ne.s32.totalorder %s24, %s27
      %p36 = scmp.eq.s32.totalorder %s19, 1
      %p37 = por %p35, %p36
      %p38 = scmp.ne.s32.totalorder %s27, %s28
      %p39 = scmp.eq.s32.totalorder %s19, 0
      %p40 = por %p38, %p39
      %p41 = scmp.ne.s32.totalorder %s27, %s28
      %p42 = scmp.eq.s32.totalorder %s20, 1
      %p43 = por %p41, %p42
      %p45 = scmp.ne.s32.totalorder %s28, %s44
      %p46 = scmp.eq.s32.totalorder %s20, 0
      %p47 = por %p45, %p46
      %s48 = ssub.s32 %s14, %s21
      %p49 = scmp.eq.s32.totalorder %s48, 0
      %s51 = sadd.s32 %s50, 1
      %s52 = scalar_select %p49, %s50, %s51
      %p55 = pneg %p49
      %p56 = scmp.eq.s32.totalorder %s14, 1
      %p57 = por %p55, %p56
      %p58 = scmp.ne.s32.totalorder %s50, %s53
      %p59 = scmp.eq.s32.totalorder %s14, 0
      %p60 = por %p58, %p59
      %p61 = scmp.ne.s32.totalorder %s50, %s53
      %p62 = scmp.eq.s32.totalorder %s19, 1
      %p63 = por %p61, %p62
      %p64 = scmp.ne.s32.totalorder %s53, %s54
      %p65 = scmp.eq.s32.totalorder %s19, 0
      %p66 = por %p64, %p65
      %p67 = scmp.ne.s32.totalorder %s53, %s54
      %p68 = scmp.eq.s32.totalorder %s20, 1
      %p69 = por %p67, %p68
      %p71 = scmp.ne.s32.totalorder %s54, %s70
      %p72 = scmp.eq.s32.totalorder %s20, 0
      %p73 = por %p71, %p72
      %s75 = sadd.s32 %s74, 1
      %p78 = scmp.eq.s32.totalorder %s14, 1
      %p79 = scmp.ne.s32.totalorder %s74, %s76
      %p80 = scmp.eq.s32.totalorder %s14, 0
      %p81 = por %p79, %p80
      %p82 = scmp.ne.s32.totalorder %s74, %s76
      %p83 = scmp.eq.s32.totalorder %s19, 1
      %p84 = por %p82, %p83
      %p85 = scmp.ne.s32.totalorder %s76, %s77
      %p86 = scmp.eq.s32.totalorder %s19, 0
      %p87 = por %p85, %p86
      %p88 = scmp.ne.s32.totalorder %s76, %s77
      %p89 = scmp.eq.s32.totalorder %s20, 1
      %p90 = por %p88, %p89
      %p92 = scmp.ne.s32.totalorder %s77, %s91
      %p93 = scmp.eq.s32.totalorder %s20, 0
      %p94 = por %p92, %p93
      %p95 = scmp.le.s32.totalorder 1, %s14
      %p96 = scmp.lt.s32.totalorder %s14, 3
      %p97 = pnand %p95, %p96
      %p98 = pneg %p97
      // Predicated region
      $region9: #{tpu_custom_call.1} parent=5 // pred_check
        _
      $region10: #{tpu_custom_call.1} parent=5 // pred_check_branch
        %100 = sbr.rel (%p97) target = $region12
      $region11: #{tpu_custom_call.1} parent=5 // pred_region
        %s101 = ssub.s32 %s14, 1
      $region12: #{tpu_custom_call.1} parent=5 // pred_fallthru
        _
      %p102 = scmp.lt.s32.totalorder %s14, 2
      // Predicated region
      $region13: #{tpu_custom_call.1} parent=5 // pred_check
        %p103 = pneg %p102
      $region14: #{tpu_custom_call.1} parent=5 // pred_check_branch
        %105 = sbr.rel (%p103) target = $region16
      $region15: #{tpu_custom_call.1} parent=5 // pred_region
        // Predicated region
        $region17: #{tpu_custom_call.1} parent=15 // pred_check
          %p106 = pneg %p34
        $region18: #{tpu_custom_call.1} parent=15 // pred_check_branch
          %108 = sbr.rel (%p106) target = $region20
        $region19: #{tpu_custom_call.1} parent=15 // pred_region
          %s109 = sand.u32 %s24, 1
          %s110 = scalar_lea.sflag [#allocation4], %s109
          %s111 = sand.u32 %s24, 1
          %s112 = smul.addr %s111, 16
          %s113 = scalar_lea.vmem [#allocation3], %s112
          %s115 = ssub.s32 256, 256
          %116 = vsyncadd %s110, %s115
          %s117 = smul.addr %s14, 128
          %s118 = scalar_lea.hbm %s0, %s117
          %s119 = sshll.u32 %s113, 4
          %s120 = int_to_ptr.vmem [resolvable:$true] %s119
          %125 = dma.hbm_to_vmem [thread:$0]  %s118, 256, %s120, %s110, 256, 128, 8
        $region20: #{tpu_custom_call.1} parent=15 // pred_fallthru
          _
        // Predicated region
        $region21: #{tpu_custom_call.1} parent=15 // pred_check
          %p126 = pneg %p60
        $region22: #{tpu_custom_call.1} parent=15 // pred_check_branch
          %128 = sbr.rel (%p126) target = $region24
        $region23: #{tpu_custom_call.1} parent=15 // pred_region
          %s129 = sand.u32 %s50, 1
          %s130 = scalar_lea.sflag [#allocation6], %s129
          %s131 = sand.u32 %s50, 1
          %s132 = smul.addr %s131, 16
          %s133 = scalar_lea.vmem [#allocation5], %s132
          %s135 = ssub.s32 256, 256
          %136 = vsyncadd %s130, %s135
          %s137 = smul.addr %s14, 128
          %s138 = scalar_lea.hbm %s1, %s137
          %s139 = sshll.u32 %s133, 4
          %s140 = int_to_ptr.vmem [resolvable:$true] %s139
          %145 = dma.hbm_to_vmem [thread:$0]  %s138, 256, %s140, %s130, 256, 128, 8
        $region24: #{tpu_custom_call.1} parent=15 // pred_fallthru
          _
      $region16: #{tpu_custom_call.1} parent=5 // pred_fallthru
        _
      %p146 = scmp.le.s32.totalorder 1, %s14
      %p147 = scmp.lt.s32.totalorder %s14, 3
      %p148 = pnand %p146, %p147
      %p149 = pneg %p148
      // Predicated region
      $region25: #{tpu_custom_call.1} parent=5 // pred_check
        _
      $region26: #{tpu_custom_call.1} parent=5 // pred_check_branch
        %151 = sbr.rel (%p148) target = $region28
      $region27: #{tpu_custom_call.1} parent=5 // pred_region
        %s152 = ssub.s32 %s14, 1
        %s153 = sand.u32 %s27, 1
        %s154 = scalar_lea.sflag [#allocation4], %s153
        %s155 = sand.u32 %s27, 1
        %s156 = smul.addr %s155, 16
        %s157 = scalar_lea.vmem [#allocation3], %s156
        // Predicated region
        $region29: #{tpu_custom_call.1} parent=27 // pred_check
          %p158 = pneg %p40
        $region30: #{tpu_custom_call.1} parent=27 // pred_check_branch
          %160 = sbr.rel (%p158) target = $region32
        $region31: #{tpu_custom_call.1} parent=27 // pred_region
          %161 = dma.done %s154, 256
        $region32: #{tpu_custom_call.1} parent=27 // pred_fallthru
          _
        %s162 = sand.u32 %s53, 1
        %s163 = scalar_lea.sflag [#allocation6], %s162
        %s164 = sand.u32 %s53, 1
        %s165 = smul.addr %s164, 16
        %s166 = scalar_lea.vmem [#allocation5], %s165
        // Predicated region
        $region33: #{tpu_custom_call.1} parent=27 // pred_check
          %p167 = pneg %p66
        $region34: #{tpu_custom_call.1} parent=27 // pred_check_branch
          %169 = sbr.rel (%p167) target = $region36
        $region35: #{tpu_custom_call.1} parent=27 // pred_region
          %170 = dma.done %s163, 256
        $region36: #{tpu_custom_call.1} parent=27 // pred_fallthru
          _
        %s171 = sand.u32 %s27, 1
        %s172 = scalar_lea.sflag [#allocation4], %s171
        %s173 = sand.u32 %s27, 1
        %s174 = smul.addr %s173, 16
        %s175 = scalar_lea.vmem [#allocation3], %s174
        %p176 = pneg %p40
        %p177 = pneg %p37
        %s178 = sand.u32 %s53, 1
        %s179 = scalar_lea.sflag [#allocation6], %s178
        %s180 = sand.u32 %s53, 1
        %s181 = smul.addr %s180, 16
        %s182 = scalar_lea.vmem [#allocation5], %s181
        %p183 = pneg %p66
        %p184 = pneg %p63
        %p185 = pneg %p87
        %p186 = pneg %p84
        %p187 = scmp.eq.s32.totalorder %s19, 0
        // Predicated region
        $region37: #{tpu_custom_call.1} parent=27 // pred_check
          %p188 = pneg %p187
        $region38: #{tpu_custom_call.1} parent=27 // pred_check_branch
          %190 = sbr.rel (%p188) target = $region40
        $region39: #{tpu_custom_call.1} parent=27 // pred_region
          %vm191 = vcmask 7168
          %192 = vst.msk [vmem:[#allocation2] sm:$0xff] %vm191, -inf
          %vm193 = vcmask 1024
          %194 = vst.msk [vmem:[#allocation2 + $0x8] sm:$0x3] %vm193, -inf
          %195 = vst.msk [vmem:[%s2] sm:$0xff] %vm191, 0
          %196 = vst.msk [vmem:[%s2 + $0x8] sm:$0x3] %vm193, 0
        $region40: #{tpu_custom_call.1} parent=27 // pred_fallthru
          _
        %v197 = vld [vmem:[%s157] sm:$0xff]
        %v198 = vld [vmem:[%s157 + $0x8] sm:$0x3]
        %v199 = vld [vmem:[%s166] sm:$0xff]
        %v200 = vld [vmem:[%s166 + $0x8] sm:$0x3]
        %v201 = vadd.f32 %v197, %v199
        %v202 = vadd.f32 %v198, %v200
        %203 = vmax.xlane.f32.xlu0 %v201
        %v204 = vpop.xlane.xlu0 %203
        %vm205 = vcmask 1041408
        %v206 = vsel %vm205, %v202, -inf
        %207 = vmax.xlane.f32.xlu0 %v206
        %v208 = vpop.xlane.xlu0 %207
        %v209 = vlaneseq
        %v210 = vand.u32 %v209, 127
        %s211 = smul.u32 %s19, 128
        %v212 = vstv %s211
        %v213 = vadd.s32 %v210, %v212
        %vm214 = vcmp.eq.f32.partialorder %v201, %v204
        %vm215 = vcmp.eq.f32.partialorder %v202, %v208
        %v216 = vsel %vm214, %v213, 2147483647
        %v217 = vsel %vm215, %v213, 2147483647
        %v218 = vand.u32 %v216, 65535
        %v219 = vshra.s32 %v216, 16
        %v220 = vcvt.s32.f32 %v218
        %v221 = vcvt.s32.f32 %v219
        %222 = vmin.xlane.f32.xlu0 %v221
        %v223 = vpop.xlane.xlu0 %222
        %vm224 = vcmp.eq.f32.partialorder %v221, %v223
        %v225 = vsel %vm224, %v220, inf
        %226 = vmin.xlane.f32.xlu0 %v225
        %v227 = vpop.xlane.xlu0 %226
        %v228 = vcvt.f32.s32 %v227
        %v229 = vcvt.f32.s32 %v223
        %v230 = vshll.u32 %v229, 16
        %v231 = vadd.s32 %v230, %v228
        %v232 = vsel %vm205, %v217, 2147483647
        %v233 = vand.u32 %v232, 65535
        %v234 = vshra.s32 %v232, 16
        %v235 = vcvt.s32.f32 %v233
        %v236 = vcvt.s32.f32 %v234
        %237 = vmin.xlane.f32.xlu0 %v236
        %v238 = vpop.xlane.xlu0 %237
        %vm239 = vcmp.eq.f32.partialorder %v236, %v238
        %v240 = vsel %vm239, %v235, inf
        %241 = vmin.xlane.f32.xlu0 %v240
        %v242 = vpop.xlane.xlu0 %241
        %v243 = vcvt.f32.s32 %v242
        %v244 = vcvt.f32.s32 %v238
        %v245 = vshll.u32 %v244, 16
        %v246 = vadd.s32 %v245, %v243
        %v247 = vld [vmem:[#allocation2] sm:$0xff]
        %v248 = vld [vmem:[#allocation2 + $0x8] sm:$0x3]
        %vm249 = vcmp.gt.f32.partialorder %v204, %v247
        %vm250 = vcmp.gt.f32.partialorder %v208, %v248
        %v251 = vld [vmem:[%s2] sm:$0xff]
        %v252 = vld [vmem:[%s2 + $0x8] sm:$0x3]
        %v253 = vsel %vm249, %v231, %v251
        %v254 = vsel %vm250, %v246, %v252
        %vm255 = vcmask 7168
        %256 = vst.msk [vmem:[%s2] sm:$0xff] %vm255, %v253
        %vm257 = vcmask 1024
        %258 = vst.msk [vmem:[%s2 + $0x8] sm:$0x3] %vm257, %v254
        %v259 = vld [vmem:[#allocation2] sm:$0xff]
        %v260 = vld [vmem:[#allocation2 + $0x8] sm:$0x3]
        %v261 = vsel %vm249, %v204, %v259
        %v262 = vsel %vm250, %v208, %v260
        %263 = vst.msk [vmem:[#allocation2] sm:$0xff] %vm255, %v261
        %264 = vst.msk [vmem:[#allocation2 + $0x8] sm:$0x3] %vm257, %v262
        // Predicated region
        $region41: #{tpu_custom_call.1} parent=27 // pred_check
          %p265 = pneg %p84
        $region42: #{tpu_custom_call.1} parent=27 // pred_check_branch
          %267 = sbr.rel (%p265) target = $region44
        $region43: #{tpu_custom_call.1} parent=27 // pred_region
          _
        $region44: #{tpu_custom_call.1} parent=27 // pred_fallthru
          _
        // Predicated region
        $region45: #{tpu_custom_call.1} parent=27 // pred_check
          %p268 = pneg %p84
        $region46: #{tpu_custom_call.1} parent=27 // pred_check_branch
          %270 = sbr.rel (%p268) target = $region48
        $region47: #{tpu_custom_call.1} parent=27 // pred_region
          _
        $region48: #{tpu_custom_call.1} parent=27 // pred_fallthru
          _
      $region28: #{tpu_custom_call.1} parent=5 // pred_fallthru
        _
      %p271 = scmp.le.s32.totalorder 2, %s14
      // Predicated region
      $region49: #{tpu_custom_call.1} parent=5 // pred_check
        %p272 = pneg %p271
      $region50: #{tpu_custom_call.1} parent=5 // pred_check_branch
        %274 = sbr.rel (%p272) target = $region52
      $region51: #{tpu_custom_call.1} parent=5 // pred_region
        %s275 = ssub.s32 %s14, 2
      $region52: #{tpu_custom_call.1} parent=5 // pred_fallthru
        _
    $region6: #{tpu_custom_call.1} parent=1 // loop_footer
      %s18 = sadd.s32 1, %s14
    $region7: #{tpu_custom_call.1} parent=1 // loop_footer_branch
      %13 = sbr.rel target = $region3
    $region8: #{tpu_custom_call.1} parent=1 // loop_exit
      _
    %276 = vsyncpa [#allocation4], 1
    %s277 = scalar_lea.sflag [#allocation4], 1
    %278 = vsyncpa %s277, 1
    %279 = vsyncpa [#allocation6], 1
    %s280 = scalar_lea.sflag [#allocation6], 1
    %281 = vsyncpa %s280, 1

</llo_original>
